<compile_context>
chip_gen: v6e
topology: v6e:2x2x1
jax: 0.10.0
libtpu: 0.0.40
codegen_flags: <defaults>
</compile_context>

<pallas_src>
import functools
import math

import jax
import jax.numpy as jnp
from jax.experimental import pallas as pl
from jax.experimental.pallas import tpu as pltpu

LANES = 128
SUBLANES = 8
MAX_BLOCK_ROWS = 4096  # (4096, 128) f32 = 2 MiB per input per pipeline buffer


def _bce_blur_kernel(pred_ref, true_ref, out_ref, *, inv_a, valid_rows_last,
                     needs_mask):
    i = pl.program_id(0)

    @pl.when(i == 0)
    def _():
        out_ref[...] = jnp.zeros_like(out_ref)

    x = pred_ref[...].astype(jnp.float32)
    y = true_ref[...].astype(jnp.float32)

    # Stable BCE-with-logits: max(x,0) - x*y + log1p(exp(-|x|)).
    # Reuse e = exp(-|x|) for both the softplus term and the exact sigmoid.
    e = jnp.exp(-jnp.abs(x))
    loss = jnp.maximum(x, 0.0) - x * y + jnp.log1p(e)

    inv = 1.0 / (1.0 + e)
    p = jnp.where(x >= 0.0, inv, e * inv)            # sigmoid(x), exact
    # alpha_factor = 1 - exp((dx - 1) / (alpha + 1e-4)); divide pre-inverted.
    loss = loss * (1.0 - jnp.exp((p - y - 1.0) * inv_a))

    def accumulate(v):
        # Pure-VPU per-step partial reduction into the resident (8, 128)
        # output block; final cross-lane reduce happens on a tiny array
        # in the wrapper.
        out_ref[...] += v.reshape(-1, SUBLANES, LANES).sum(axis=0)

    if needs_mask:
        # Only the final grid step can contain out-of-bounds (garbage) rows.
        last = pl.num_programs(0) - 1

        @pl.when(i != last)
        def _():
            accumulate(loss)

        @pl.when(i == last)
        def _():
            row_ids = jax.lax.broadcasted_iota(jnp.int32, loss.shape, 0)
            accumulate(jnp.where(row_ids < valid_rows_last, loss, 0.0))
    else:
        accumulate(loss)


def _loss_sum_jnp(x, y, inv_a):
    """Plain-jnp sum of the per-element loss (used for the tiny tail)."""
    x = x.astype(jnp.float32)
    y = y.astype(jnp.float32)
    e = jnp.exp(-jnp.abs(x))
    loss = jnp.maximum(x, 0.0) - x * y + jnp.log1p(e)
    inv = 1.0 / (1.0 + e)
    p = jnp.where(x >= 0.0, inv, e * inv)
    loss = loss * (1.0 - jnp.exp((p - y - 1.0) * inv_a))
    return jnp.sum(loss)


@functools.partial(jax.jit, static_argnames=("alpha",))
def bce_blur_with_logits_loss(pred, true, *, alpha=0.05):
    """pred, true: same shape (e.g. NCHW). Returns scalar mean loss (f32)."""
    assert pred.shape == true.shape
    n = math.prod(pred.shape)
    assert n > 0
    inv_a = 1.0 / (float(alpha) + 0.0001)            # strength-reduced divide

    rows = n // LANES                 # number of complete 128-lane rows
    rem = n - rows * LANES            # < 128 trailing elements

    if rows < SUBLANES:
        # Tiny input (< 1024 elements): not worth a kernel launch.
        return _loss_sum_jnp(jnp.ravel(pred), jnp.ravel(true),
                             inv_a) / jnp.float32(n)

    block_rows = min(MAX_BLOCK_ROWS, (rows // SUBLANES) * SUBLANES)
    grid = pl.cdiv(rows, block_rows)
    valid_rows_last = rows - (grid - 1) * block_rows
    needs_mask = valid_rows_last != block_rows
    main_elems = rows * LANES

    def to_slab(a):
        flat = jnp.ravel(a)                          # free for contiguous arrays
        if rem:
            # Prefix slice only when n % 128 != 0 (zero-copy otherwise).
            flat = flat[:main_elems]
        return flat.reshape(rows, LANES)

    pred2 = to_slab(pred)
    true2 = to_slab(true)

    kernel = functools.partial(
        _bce_blur_kernel, inv_a=inv_a, valid_rows_last=valid_rows_last,
        needs_mask=needs_mask)

    in_spec = pl.BlockSpec((block_rows, LANES), lambda i: (i, 0))
    out_spec = pl.BlockSpec((SUBLANES, LANES), lambda i: (0, 0))

    partial_sums = pl.pallas_call(
        kernel,
        out_shape=jax.ShapeDtypeStruct((SUBLANES, LANES), jnp.float32),
        grid_spec=pltpu.PrefetchScalarGridSpec(
            num_scalar_prefetch=0,
            grid=(grid,),
            in_specs=[in_spec, in_spec],
            out_specs=out_spec,
        ),
        compiler_params=pltpu.CompilerParams(
            dimension_semantics=("arbitrary",),
            vmem_limit_bytes=48 * 1024 * 1024,
        ),
    )(pred2, true2)

    total = jnp.sum(partial_sums)
    if rem:
        total = total + _loss_sum_jnp(jnp.ravel(pred)[main_elems:],
                                      jnp.ravel(true)[main_elems:], inv_a)
    return total / jnp.float32(n)


def _reference(pred, true, alpha=0.05):
    x = pred.astype(jnp.float32)
    y = true.astype(jnp.float32)
    loss = jnp.maximum(x, 0.0) - x * y + jnp.log1p(jnp.exp(-jnp.abs(x)))
    p = jax.nn.sigmoid(x)
    dx = p - y
    loss = loss * (1.0 - jnp.exp((dx - 1.0) / (alpha + 0.0001)))
    return jnp.mean(loss)


if __name__ == "__main__":
    key = jax.random.PRNGKey(0)
    k_pred, k_true = jax.random.split(key)

    # NCHW inputs, like the PyTorch module would receive.
    shape = (2, 4, 16, 16)
    pred = jax.random.normal(k_pred, shape, dtype=jnp.float32)
    true = (jax.random.uniform(k_true, shape) > 0.5).astype(jnp.float32)

    out = jax.block_until_ready(bce_blur_with_logits_loss(pred, true, alpha=0.05))
    ref = _reference(pred, true, alpha=0.05)
    assert jnp.allclose(out, ref, atol=1e-5, rtol=1e-5), (out, ref)

    # Second case exercising the partial-last-block mask and the <128-elem tail.
    shape2 = (3, 5, 33, 17)
    pred2 = jax.random.normal(k_pred, shape2, dtype=jnp.float32)
    true2 = (jax.random.uniform(k_true, shape2) > 0.5).astype(jnp.float32)
    out2 = jax.block_until_ready(bce_blur_with_logits_loss(pred2, true2, alpha=0.05))
    ref2 = _reference(pred2, true2, alpha=0.05)
    assert jnp.allclose(out2, ref2, atol=1e-5, rtol=1e-5), (out2, ref2)

    print("KERNEL_OK")
</pallas_src>

<mosaic_0001>
module attributes {stable_mosaic.version = 11 : i64} {
  func.func @_bce_blur_kernel(%arg0: i32, %arg1: memref<16x128xf32, #tpu.memory_space<vmem>>, %arg2: memref<16x128xf32, #tpu.memory_space<vmem>>, %arg3: memref<8x128xf32, #tpu.memory_space<vmem>>) attributes {dimension_semantics = [#tpu.dimension_semantics<arbitrary>], iteration_bounds = array<i64: 1>, scalar_prefetch = 0 : i64, scratch_operands = 0 : i64, tpu.core_type = #tpu.core_type<tc>, window_params = [{transform_indices = @transform_0, window_bounds = array<i64: 16, 128>}, {transform_indices = @transform_1, window_bounds = array<i64: 16, 128>}, {pipeline_mode = #tpu.pipeline_mode<synchronous>, transform_indices = @transform_2, window_bounds = array<i64: 8, 128>}]} {
    %c0_i32 = arith.constant 0 : i32
    %0 = arith.cmpi eq, %arg0, %c0_i32 : i32
    %1 = arith.extui %0 : i1 to i32
    %c0_i32_0 = arith.constant 0 : i32
    %2 = arith.cmpi ne, %1, %c0_i32_0 : i32
    scf.if %2 {
      %cst_16 = arith.constant 0.000000e+00 : f32
      %37 = vector.broadcast %cst_16 : f32 to vector<8x128xf32>
      %c0_17 = arith.constant 0 : index
      %c0_18 = arith.constant 0 : index
      %38 = vector.load %arg3[%c0_17, %c0_18] : memref<8x128xf32, #tpu.memory_space<vmem>>, vector<8x128xf32>
      tpu.vector_store %arg3[%c0_17, %c0_18], %37 {strides = array<i32>} : memref<8x128xf32, #tpu.memory_space<vmem>>, vector<8x128xf32>,
    } else {
    }
    %c0 = arith.constant 0 : index
    %c0_1 = arith.constant 0 : index
    %3 = vector.load %arg1[%c0, %c0_1] : memref<16x128xf32, #tpu.memory_space<vmem>>, vector<16x128xf32>
    %c0_2 = arith.constant 0 : index
    %c0_3 = arith.constant 0 : index
    %4 = vector.load %arg2[%c0_2, %c0_3] : memref<16x128xf32, #tpu.memory_space<vmem>>, vector<16x128xf32>
    %5 = math.absf %3 : vector<16x128xf32>
    %cst = arith.constant 0.000000e+00 : f32
    %6 = vector.broadcast %cst : f32 to vector<16x128xf32>
    %7 = arith.subf %6, %5 : vector<16x128xf32>
    %8 = math.exp %7 : vector<16x128xf32>
    %cst_4 = arith.constant 0.000000e+00 : f32
    %9 = vector.broadcast %cst_4 : f32 to vector<16x128xf32>
    %10 = arith.maximumf %3, %9 : vector<16x128xf32>
    %11 = arith.mulf %3, %4 : vector<16x128xf32>
    %12 = arith.subf %10, %11 : vector<16x128xf32>
    %13 = math.log1p %8 : vector<16x128xf32>
    %14 = arith.addf %12, %13 : vector<16x128xf32>
    %cst_5 = arith.constant 1.000000e+00 : f32
    %15 = vector.broadcast %cst_5 : f32 to vector<16x128xf32>
    %16 = arith.addf %15, %8 : vector<16x128xf32>
    %cst_6 = arith.constant 1.000000e+00 : f32
    %17 = vector.broadcast %cst_6 : f32 to vector<16x128xf32>
    %18 = arith.divf %17, %16 : vector<16x128xf32>
    %cst_7 = arith.constant 0.000000e+00 : f32
    %19 = vector.broadcast %cst_7 : f32 to vector<16x128xf32>
    %20 = arith.cmpf oge, %3, %19 : vector<16x128xf32>
    %21 = arith.mulf %8, %18 : vector<16x128xf32>
    %22 = arith.select %20, %18, %21 : vector<16x128xi1>, vector<16x128xf32>
    %23 = arith.subf %22, %4 : vector<16x128xf32>
    %cst_8 = arith.constant 1.000000e+00 : f32
    %24 = vector.broadcast %cst_8 : f32 to vector<16x128xf32>
    %25 = arith.subf %23, %24 : vector<16x128xf32>
    %cst_9 = arith.constant 19.9600792 : f32
    %26 = vector.broadcast %cst_9 : f32 to vector<16x128xf32>
    %27 = arith.mulf %25, %26 : vector<16x128xf32>
    %28 = math.exp %27 : vector<16x128xf32>
    %cst_10 = arith.constant 1.000000e+00 : f32
    %29 = vector.broadcast %cst_10 : f32 to vector<16x128xf32>
    %30 = arith.subf %29, %28 : vector<16x128xf32>
    %31 = arith.mulf %14, %30 : vector<16x128xf32>
    %c0_11 = arith.constant 0 : index
    %c0_12 = arith.constant 0 : index
    %32 = vector.load %arg3[%c0_11, %c0_12] : memref<8x128xf32, #tpu.memory_space<vmem>>, vector<8x128xf32>
    %33 = vector.shape_cast %31 : vector<16x128xf32> to vector<2x8x128xf32>
    %cst_13 = arith.constant dense<0.000000e+00> : vector<8x128xf32>
    %34 = vector.multi_reduction <add>, %33, %cst_13 [0] : vector<2x8x128xf32> to vector<8x128xf32>
    %35 = arith.addf %32, %34 : vector<8x128xf32>
    %c0_14 = arith.constant 0 : index
    %c0_15 = arith.constant 0 : index
    %36 = vector.load %arg3[%c0_14, %c0_15] : memref<8x128xf32, #tpu.memory_space<vmem>>, vector<8x128xf32>
    tpu.vector_store %arg3[%c0_14, %c0_15], %35 {strides = array<i32>} : memref<8x128xf32, #tpu.memory_space<vmem>>, vector<8x128xf32>,
    return
  }
  func.func @transform_0(%arg0: i32) -> (i32, i32) {
    %c0_i32 = arith.constant 0 : i32
    %c0_i32_0 = arith.constant 0 : i32
    return %arg0, %c0_i32 : i32, i32
  }
  func.func @transform_1(%arg0: i32) -> (i32, i32) {
    %c0_i32 = arith.constant 0 : i32
    %c0_i32_0 = arith.constant 0 : i32
    return %arg0, %c0_i32 : i32, i32
  }
  func.func @transform_2(%arg0: i32) -> (i32, i32) {
    %c0_i32 = arith.constant 0 : i32
    %c0_i32_0 = arith.constant 0 : i32
    %c0_i32_1 = arith.constant 0 : i32
    return %c0_i32, %c0_i32_0 : i32, i32
  }
}

</mosaic_0001>

<llo_original>
// kernel: bce_blur_with_logits_loss.1
$region0: #{bce_blur_with_logits_loss.1}
  #allocation0 [shape = 'u32[]', space=smem, size = 0x4, offset = 0x4, fixed_abs, tag = 'smem constant byte address 0x4 - core index']
  #allocation1 [shape = 'u32[144,128]{1,0:T(1,128)}', space=vmem, size = 0x12000, scoped, tag = 'internal scratch']
  %s0 = inlined_call_operand.vmem [shape: f32[16,128], index: 0, kind: input, shape index: {}]
  %s1 = inlined_call_operand.vmem [shape: f32[16,128], index: 1, kind: input, shape index: {}]
  %s2 = inlined_call_operand.vmem [shape: f32[8,128], index: 2, kind: output, shape index: {}]
  %s3 = sld [smem:[#allocation0]]
  $region22: #{bce_blur_with_logits_loss.1} parent=0
    _
  %s5 = ssub.s32 1, %s3
  %s6 = scalar_select 0, %s5, %s3
  // Predicated region
  $region2: #{bce_blur_with_logits_loss.1} parent=0 // pred_check
    _
  $region3: #{bce_blur_with_logits_loss.1} parent=0 // pred_check_branch
    %8 = sbr.rel (0) target = $region5
  $region4: #{bce_blur_with_logits_loss.1} parent=0 // pred_region
    _
  $region5: #{bce_blur_with_logits_loss.1} parent=0 // pred_fallthru
    _
  // Predicated region
  $region6: #{bce_blur_with_logits_loss.1} parent=0 // pred_check
    _
  $region7: #{bce_blur_with_logits_loss.1} parent=0 // pred_check_branch
    %10 = sbr.rel (0) target = $region9
  $region8: #{bce_blur_with_logits_loss.1} parent=0 // pred_region
    _
  $region9: #{bce_blur_with_logits_loss.1} parent=0 // pred_fallthru
    _
  %p11 = scmp.eq.s32.totalorder 0, 0
  // Predicated region
  $region10: #{bce_blur_with_logits_loss.1} parent=0 // pred_check
    %p12 = pneg %p11
  $region11: #{bce_blur_with_logits_loss.1} parent=0 // pred_check_branch
    %14 = sbr.rel (%p12) target = $region13
  $region12: #{bce_blur_with_logits_loss.1} parent=0 // pred_region
    %15 = vst [vmem:[%s2] sm:$0xff] 0.0
  $region13: #{bce_blur_with_logits_loss.1} parent=0 // pred_fallthru
    _
  %v16 = vld [vmem:[%s0] sm:$0xff]
  %v17 = vld [vmem:[%s0 + $0x8] sm:$0xff]
  %v18 = vld [vmem:[%s1] sm:$0xff]
  %v19 = vld [vmem:[%s1 + $0x8] sm:$0xff]
  %v20 = vand.u32 2147483647, %v16
  %v21 = vand.u32 2147483647, %v17
  %v22 = vsub.f32 0.0, %v20
  %v23 = vsub.f32 0.0, %v21
  %v24 = vmul.f32 %v22, 1.442695
  %v25 = vpow.pop %v24
  %v26 = vmul.f32 %v23, 1.442695
  %v27 = vpow.pop %v26
  %v28 = vmax.f32 %v16, 0.0
  %v29 = vmax.f32 %v17, 0.0
  %v30 = vmul.f32 %v16, %v18
  %v31 = vmul.f32 %v17, %v19
  %v32 = vsub.f32 %v28, %v30
  %v33 = vsub.f32 %v29, %v31
  %v34 = vadd.f32 %v25, 1.0
  %v35 = vlog2.pop %v34
  %v36 = vmul.f32 %v35, 0.6931472
  %v37 = vmul.f32 -0.5, %v25
  %v38 = vadd.f32 %v37, 1.0
  %v39 = vmul.f32 %v38, %v25
  %v40 = vand.u32 2147483647, %v25
  %vm41 = vcmp.lt.f32.partialorder %v40, 0.0004427343
  %v42 = vsel %vm41, %v39, %v36
  %v43 = vadd.f32 %v27, 1.0
  %v44 = vlog2.pop %v43
  %v45 = vmul.f32 %v44, 0.6931472
  %v46 = vmul.f32 -0.5, %v27
  %v47 = vadd.f32 %v46, 1.0
  %v48 = vmul.f32 %v47, %v27
  %v49 = vand.u32 2147483647, %v27
  %vm50 = vcmp.lt.f32.partialorder %v49, 0.0004427343
  %v51 = vsel %vm50, %v48, %v45
  %v52 = vadd.f32 %v32, %v42
  %v53 = vadd.f32 %v33, %v51
  %v54 = vadd.f32 %v25, 1.0
  %v55 = vadd.f32 %v27, 1.0
  %v56 = vrcp.pop %v54
  %v57 = vmul.f32 1.0, %v56
  %v58 = vrcp.pop %v55
  %v59 = vmul.f32 1.0, %v58
  %vm60 = vcmp.ge.f32.partialorder %v16, 0.0
  %vm61 = vcmp.ge.f32.partialorder %v17, 0.0
  %v62 = vmul.f32 %v25, %v57
  %v63 = vmul.f32 %v27, %v59
  %v64 = vsel %vm60, %v57, %v62
  %v65 = vsel %vm61, %v59, %v63
  %v66 = vsub.f32 %v64, %v18
  %v67 = vsub.f32 %v65, %v19
  %v68 = vsub.f32 %v66, 1.0
  %v69 = vsub.f32 %v67, 1.0
  %v70 = vmul.f32 %v68, 19.96008
  %v71 = vmul.f32 %v69, 19.96008
  %v72 = vmul.f32 %v70, 1.442695
  %v73 = vpow.pop %v72
  %v74 = vmul.f32 %v71, 1.442695
  %v75 = vpow.pop %v74
  %v76 = vsub.f32 1.0, %v73
  %v77 = vsub.f32 1.0, %v75
  %v78 = vmul.f32 %v52, %v76
  %v79 = vmul.f32 %v53, %v77
  %v80 = vld [vmem:[%s2] sm:$0xff]
  %v81 = vadd.f32 %v78, %v79
  %v82 = vadd.f32 %v80, %v81
  %83 = vst [vmem:[%s2] sm:$0xff] %v82
  // Predicated region
  $region14: #{bce_blur_with_logits_loss.1} parent=0 // pred_check
    _
  $region15: #{bce_blur_with_logits_loss.1} parent=0 // pred_check_branch
    %85 = sbr.rel (0) target = $region17
  $region16: #{bce_blur_with_logits_loss.1} parent=0 // pred_region
    _
  $region17: #{bce_blur_with_logits_loss.1} parent=0 // pred_fallthru
    _
  // Predicated region
  $region18: #{bce_blur_with_logits_loss.1} parent=0 // pred_check
    _
  $region19: #{bce_blur_with_logits_loss.1} parent=0 // pred_check_branch
    %87 = sbr.rel (0) target = $region21
  $region20: #{bce_blur_with_logits_loss.1} parent=0 // pred_region
    _
  $region21: #{bce_blur_with_logits_loss.1} parent=0 // pred_fallthru
    _

</llo_original>
